<compile_context>
chip_gen: v7x
topology: tpu7x:2x2x1
jax: 0.10.0
libtpu: 0.0.40
codegen_flags: <defaults>
</compile_context>

<pallas_src>
import math

import jax
import jax.numpy as jnp
from jax.experimental import pallas as pl
from jax.experimental.pallas import tpu as pltpu


# --------------------------------------------------------------------------
# Fused Pallas kernel: whole coupling block for one TM-row tile.
# --------------------------------------------------------------------------
def _nice_coupling_kernel(x1_ref, x2_ref,
                          fw1_ref, fb1_ref, fw2_ref, fb2_ref,
                          gw1_ref, gb1_ref, gw2_ref, gb2_ref,
                          y1_ref, y2_ref):
    bf16 = jnp.bfloat16
    x1 = x1_ref[...]                                    # (TM, s1) f32
    x2 = x2_ref[...]                                    # (TM, s2) f32

    # F(x2) = Linear -> ReLU -> Linear   (bf16 MXU operands, f32 accumulate)
    h = jnp.dot(x2.astype(bf16), fw1_ref[...],
                preferred_element_type=jnp.float32)
    h = jnp.maximum(h + fb1_ref[...], 0.0)              # f32 VPU
    f_out = jnp.dot(h.astype(bf16), fw2_ref[...],
                    preferred_element_type=jnp.float32)
    y1 = x1 + f_out + fb2_ref[...]                      # f32 residual

    # G(y1) = Linear -> ReLU -> Linear
    g = jnp.dot(y1.astype(bf16), gw1_ref[...],
                preferred_element_type=jnp.float32)
    g = jnp.maximum(g + gb1_ref[...], 0.0)
    g_out = jnp.dot(g.astype(bf16), gw2_ref[...],
                    preferred_element_type=jnp.float32)
    y2 = x2 + g_out + gb2_ref[...]

    y1_ref[...] = y1.astype(y1_ref.dtype)
    y2_ref[...] = y2.astype(y2_ref.dtype)


def nice_coupling_forward(x, params, *, tm=512):
    """x: (B, S, C) float32 -> (B, S, C) float32 (rev=False, no conditions)."""
    B, S, C = x.shape
    split1 = C // 2
    split2 = C - split1
    hf = params["f_w1"].shape[1]
    hg = params["g_w1"].shape[1]

    bf16, f32 = jnp.bfloat16, jnp.float32

    # Flatten (B, S) -> M rows; pick a row tile TM (multiple of 8, <= tm) and
    # pad M up to a multiple of TM (padded rows are sliced off afterwards).
    M = B * S
    TM = min(tm, pl.cdiv(M, 8) * 8)
    M_pad = pl.cdiv(M, TM) * TM

    xf = x.reshape(M, C)
    x1 = xf[:, :split1]          # split in the wrapper -> lane-0 aligned inputs
    x2 = xf[:, split1:]
    if M_pad != M:
        pad = ((0, M_pad - M), (0, 0))
        x1 = jnp.pad(x1, pad)
        x2 = jnp.pad(x2, pad)

    row_spec1 = pl.BlockSpec((TM, split1), lambda i: (i, 0))
    row_spec2 = pl.BlockSpec((TM, split2), lambda i: (i, 0))

    def resident(shape):
        # Small weights/biases: keep the full array resident in VMEM for every
        # grid step (constant block index -> loaded once).
        return pl.BlockSpec(shape, lambda i: (0,) * len(shape))

    y1, y2 = pl.pallas_call(
        _nice_coupling_kernel,
        out_shape=(jax.ShapeDtypeStruct((M_pad, split1), f32),
                   jax.ShapeDtypeStruct((M_pad, split2), f32)),
        grid=(M_pad // TM,),
        in_specs=[
            row_spec1, row_spec2,
            resident((split2, hf)), resident((1, hf)),
            resident((hf, split1)), resident((1, split1)),
            resident((split1, hg)), resident((1, hg)),
            resident((hg, split2)), resident((1, split2)),
        ],
        out_specs=(row_spec1, row_spec2),
        compiler_params=pltpu.CompilerParams(
            dimension_semantics=("parallel",)),   # M tiles are independent
    )(x1, x2,
      params["f_w1"].astype(bf16), params["f_b1"].reshape(1, hf).astype(f32),
      params["f_w2"].astype(bf16), params["f_b2"].reshape(1, split1).astype(f32),
      params["g_w1"].astype(bf16), params["g_b1"].reshape(1, hg).astype(f32),
      params["g_w2"].astype(bf16), params["g_b2"].reshape(1, split2).astype(f32))

    out = jnp.concatenate([y1[:M], y2[:M]], axis=-1)
    return out.reshape(B, S, C)


# --------------------------------------------------------------------------
# Pure-JAX references (correctness) and parameter init
# --------------------------------------------------------------------------
def nice_coupling_reference_f32(x, params):
    """Exact module semantics, full f32."""
    split1 = x.shape[-1] // 2
    x1, x2 = x[..., :split1], x[..., split1:]

    def mlp(z, w1, b1, w2, b2):
        return jnp.maximum(jnp.dot(z, w1) + b1, 0.0) @ w2 + b2

    y1 = x1 + mlp(x2, params["f_w1"], params["f_b1"],
                  params["f_w2"], params["f_b2"])
    y2 = x2 + mlp(y1, params["g_w1"], params["g_b1"],
                  params["g_w2"], params["g_b2"])
    return jnp.concatenate([y1, y2], axis=-1)


def nice_coupling_reference_mixed(x, params):
    """Mirrors the kernel's precision: bf16 matmul operands, f32 accumulation."""
    bf16 = jnp.bfloat16
    split1 = x.shape[-1] // 2
    x1, x2 = x[..., :split1], x[..., split1:]

    def mlp(z, w1, b1, w2, b2):
        h = jnp.dot(z.astype(bf16), w1.astype(bf16),
                    preferred_element_type=jnp.float32)
        h = jnp.maximum(h + b1, 0.0)
        return jnp.dot(h.astype(bf16), w2.astype(bf16),
                       preferred_element_type=jnp.float32) + b2

    y1 = x1 + mlp(x2, params["f_w1"], params["f_b1"],
                  params["f_w2"], params["f_b2"])
    y2 = x2 + mlp(y1, params["g_w1"], params["g_b1"],
                  params["g_w2"], params["g_b2"])
    return jnp.concatenate([y1, y2], axis=-1)


def init_nice_params(key, channels, reduction_factor=2):
    split1 = channels // 2
    split2 = channels - split1
    hf = split2 // reduction_factor
    hg = split1 // reduction_factor
    ks = jax.random.split(key, 8)

    def lin(kw, shape, fan_in):
        bound = 1.0 / math.sqrt(fan_in)
        return jax.random.uniform(kw, shape, jnp.float32, -bound, bound)

    return {
        "f_w1": lin(ks[0], (split2, hf), split2),
        "f_b1": lin(ks[1], (hf,), split2),
        "f_w2": lin(ks[2], (hf, split1), hf),
        "f_b2": lin(ks[3], (split1,), hf),
        "g_w1": lin(ks[4], (split1, hg), split1),
        "g_b1": lin(ks[5], (hg,), split1),
        "g_w2": lin(ks[6], (hg, split2), hg),
        "g_b2": lin(ks[7], (split2,), hg),
    }


if __name__ == "__main__":
    # dims_in = [(channels, seq)] -> split along the last (feature) axis,
    # exactly as the PyTorch forward does with x[:, :, :split_len1].
    B, S, C = 2, 8, 32          # batch, seq, channels

    key = jax.random.PRNGKey(0)
    kx, kp = jax.random.split(key)
    x = jax.random.normal(kx, (B, S, C), dtype=jnp.float32)
    params = init_nice_params(kp, C, reduction_factor=2)

    out = nice_coupling_forward(x, params)
    out = jax.block_until_ready(out)

    ref_mixed = nice_coupling_reference_mixed(x, params)  # same precision recipe
    ref_f32 = nice_coupling_reference_f32(x, params)      # exact module math

    assert out.shape == (B, S, C)
    assert bool(jnp.all(jnp.isfinite(out)))
    # Tight check against the bf16-operand / f32-accumulate reference.
    assert bool(jnp.allclose(out, ref_mixed, rtol=1e-4, atol=1e-4)), \
        float(jnp.max(jnp.abs(out - ref_mixed)))
    # Coarse sanity check that the bf16 precision trade-off stays close to the
    # pure-f32 module semantics.
    assert bool(jnp.allclose(out, ref_f32, rtol=1e-2, atol=1e-1)), \
        float(jnp.max(jnp.abs(out - ref_f32)))
    print("KERNEL_OK")
</pallas_src>

<mosaic_0001>
module attributes {stable_mosaic.version = 11 : i64} {
  func.func @_nice_coupling_kernel(%arg0: i32, %arg1: memref<16x16xf32, #tpu.memory_space<vmem>>, %arg2: memref<16x16xf32, #tpu.memory_space<vmem>>, %arg3: memref<16x8xbf16, #tpu.memory_space<vmem>>, %arg4: memref<1x8xf32, #tpu.memory_space<vmem>>, %arg5: memref<8x16xbf16, #tpu.memory_space<vmem>>, %arg6: memref<1x16xf32, #tpu.memory_space<vmem>>, %arg7: memref<16x8xbf16, #tpu.memory_space<vmem>>, %arg8: memref<1x8xf32, #tpu.memory_space<vmem>>, %arg9: memref<8x16xbf16, #tpu.memory_space<vmem>>, %arg10: memref<1x16xf32, #tpu.memory_space<vmem>>, %arg11: memref<16x16xf32, #tpu.memory_space<vmem>>, %arg12: memref<16x16xf32, #tpu.memory_space<vmem>>) attributes {dimension_semantics = [#tpu.dimension_semantics<parallel>], iteration_bounds = array<i64: 1>, scalar_prefetch = 0 : i64, scratch_operands = 0 : i64, tpu.core_type = #tpu.core_type<tc>, window_params = [{transform_indices = @transform_0, window_bounds = array<i64: 16, 16>}, {transform_indices = @transform_1, window_bounds = array<i64: 16, 16>}, {pipeline_mode = #tpu.pipeline_mode<synchronous>, transform_indices = @transform_2, window_bounds = array<i64: 16, 8>}, {pipeline_mode = #tpu.pipeline_mode<synchronous>, transform_indices = @transform_3, window_bounds = array<i64: 1, 8>}, {pipeline_mode = #tpu.pipeline_mode<synchronous>, transform_indices = @transform_4, window_bounds = array<i64: 8, 16>}, {pipeline_mode = #tpu.pipeline_mode<synchronous>, transform_indices = @transform_5, window_bounds = array<i64: 1, 16>}, {pipeline_mode = #tpu.pipeline_mode<synchronous>, transform_indices = @transform_6, window_bounds = array<i64: 16, 8>}, {pipeline_mode = #tpu.pipeline_mode<synchronous>, transform_indices = @transform_7, window_bounds = array<i64: 1, 8>}, {pipeline_mode = #tpu.pipeline_mode<synchronous>, transform_indices = @transform_8, window_bounds = array<i64: 8, 16>}, {pipeline_mode = #tpu.pipeline_mode<synchronous>, transform_indices = @transform_9, window_bounds = array<i64: 1, 16>}, {transform_indices = @transform_10, window_bounds = array<i64: 16, 16>}, {transform_indices = @transform_11, window_bounds = array<i64: 16, 16>}]} {
    %c0 = arith.constant 0 : index
    %c0_0 = arith.constant 0 : index
    %0 = vector.load %arg1[%c0, %c0_0] : memref<16x16xf32, #tpu.memory_space<vmem>>, vector<16x16xf32>
    %c0_1 = arith.constant 0 : index
    %c0_2 = arith.constant 0 : index
    %1 = vector.load %arg2[%c0_1, %c0_2] : memref<16x16xf32, #tpu.memory_space<vmem>>, vector<16x16xf32>
    %2 = arith.truncf %1 : vector<16x16xf32> to vector<16x16xbf16>
    %c0_3 = arith.constant 0 : index
    %c0_4 = arith.constant 0 : index
    %3 = vector.load %arg3[%c0_3, %c0_4] : memref<16x8xbf16, #tpu.memory_space<vmem>>, vector<16x8xbf16>
    %cst = arith.constant dense<0.000000e+00> : vector<16x8xf32>
    %4 = tpu.matmul %2, %3, %cst {dimension_numbers = #tpu.dot_dimension_numbers<[1], [0], [0], [1], [0, 0, 1, 1], [], []>} : vector<16x16xbf16>, vector<16x8xbf16>, vector<16x8xf32> -> vector<16x8xf32>
    %c0_5 = arith.constant 0 : index
    %c0_6 = arith.constant 0 : index
    %5 = vector.load %arg4[%c0_5, %c0_6] : memref<1x8xf32, #tpu.memory_space<vmem>>, vector<1x8xf32>
    %6 = vector.broadcast %5 : vector<1x8xf32> to vector<16x8xf32>
    %7 = arith.addf %4, %6 : vector<16x8xf32>
    %cst_7 = arith.constant 0.000000e+00 : f32
    %8 = vector.broadcast %cst_7 : f32 to vector<16x8xf32>
    %9 = arith.maximumf %7, %8 : vector<16x8xf32>
    %10 = arith.truncf %9 : vector<16x8xf32> to vector<16x8xbf16>
    %c0_8 = arith.constant 0 : index
    %c0_9 = arith.constant 0 : index
    %11 = vector.load %arg5[%c0_8, %c0_9] : memref<8x16xbf16, #tpu.memory_space<vmem>>, vector<8x16xbf16>
    %cst_10 = arith.constant dense<0.000000e+00> : vector<16x16xf32>
    %12 = tpu.matmul %10, %11, %cst_10 {dimension_numbers = #tpu.dot_dimension_numbers<[1], [0], [0], [1], [0, 0, 1, 1], [], []>} : vector<16x8xbf16>, vector<8x16xbf16>, vector<16x16xf32> -> vector<16x16xf32>
    %13 = arith.addf %0, %12 : vector<16x16xf32>
    %c0_11 = arith.constant 0 : index
    %c0_12 = arith.constant 0 : index
    %14 = vector.load %arg6[%c0_11, %c0_12] : memref<1x16xf32, #tpu.memory_space<vmem>>, vector<1x16xf32>
    %15 = vector.broadcast %14 : vector<1x16xf32> to vector<16x16xf32>
    %16 = arith.addf %13, %15 : vector<16x16xf32>
    %17 = arith.truncf %16 : vector<16x16xf32> to vector<16x16xbf16>
    %c0_13 = arith.constant 0 : index
    %c0_14 = arith.constant 0 : index
    %18 = vector.load %arg7[%c0_13, %c0_14] : memref<16x8xbf16, #tpu.memory_space<vmem>>, vector<16x8xbf16>
    %cst_15 = arith.constant dense<0.000000e+00> : vector<16x8xf32>
    %19 = tpu.matmul %17, %18, %cst_15 {dimension_numbers = #tpu.dot_dimension_numbers<[1], [0], [0], [1], [0, 0, 1, 1], [], []>} : vector<16x16xbf16>, vector<16x8xbf16>, vector<16x8xf32> -> vector<16x8xf32>
    %c0_16 = arith.constant 0 : index
    %c0_17 = arith.constant 0 : index
    %20 = vector.load %arg8[%c0_16, %c0_17] : memref<1x8xf32, #tpu.memory_space<vmem>>, vector<1x8xf32>
    %21 = vector.broadcast %20 : vector<1x8xf32> to vector<16x8xf32>
    %22 = arith.addf %19, %21 : vector<16x8xf32>
    %cst_18 = arith.constant 0.000000e+00 : f32
    %23 = vector.broadcast %cst_18 : f32 to vector<16x8xf32>
    %24 = arith.maximumf %22, %23 : vector<16x8xf32>
    %25 = arith.truncf %24 : vector<16x8xf32> to vector<16x8xbf16>
    %c0_19 = arith.constant 0 : index
    %c0_20 = arith.constant 0 : index
    %26 = vector.load %arg9[%c0_19, %c0_20] : memref<8x16xbf16, #tpu.memory_space<vmem>>, vector<8x16xbf16>
    %cst_21 = arith.constant dense<0.000000e+00> : vector<16x16xf32>
    %27 = tpu.matmul %25, %26, %cst_21 {dimension_numbers = #tpu.dot_dimension_numbers<[1], [0], [0], [1], [0, 0, 1, 1], [], []>} : vector<16x8xbf16>, vector<8x16xbf16>, vector<16x16xf32> -> vector<16x16xf32>
    %28 = arith.addf %1, %27 : vector<16x16xf32>
    %c0_22 = arith.constant 0 : index
    %c0_23 = arith.constant 0 : index
    %29 = vector.load %arg10[%c0_22, %c0_23] : memref<1x16xf32, #tpu.memory_space<vmem>>, vector<1x16xf32>
    %30 = vector.broadcast %29 : vector<1x16xf32> to vector<16x16xf32>
    %31 = arith.addf %28, %30 : vector<16x16xf32>
    %c0_24 = arith.constant 0 : index
    %c0_25 = arith.constant 0 : index
    %32 = vector.load %arg11[%c0_24, %c0_25] : memref<16x16xf32, #tpu.memory_space<vmem>>, vector<16x16xf32>
    tpu.vector_store %arg11[%c0_24, %c0_25], %16 {strides = array<i32>} : memref<16x16xf32, #tpu.memory_space<vmem>>, vector<16x16xf32>,
    %c0_26 = arith.constant 0 : index
    %c0_27 = arith.constant 0 : index
    %33 = vector.load %arg12[%c0_26, %c0_27] : memref<16x16xf32, #tpu.memory_space<vmem>>, vector<16x16xf32>
    tpu.vector_store %arg12[%c0_26, %c0_27], %31 {strides = array<i32>} : memref<16x16xf32, #tpu.memory_space<vmem>>, vector<16x16xf32>,
    return
  }
  func.func @transform_0(%arg0: i32) -> (i32, i32) {
    %c0_i32 = arith.constant 0 : i32
    %c0_i32_0 = arith.constant 0 : i32
    return %arg0, %c0_i32 : i32, i32
  }
  func.func @transform_1(%arg0: i32) -> (i32, i32) {
    %c0_i32 = arith.constant 0 : i32
    %c0_i32_0 = arith.constant 0 : i32
    return %arg0, %c0_i32 : i32, i32
  }
  func.func @transform_2(%arg0: i32) -> (i32, i32) {
    %c0_i32 = arith.constant 0 : i32
    %c0_i32_0 = arith.constant 0 : i32
    %c0_i32_1 = arith.constant 0 : i32
    return %c0_i32, %c0_i32_0 : i32, i32
  }
  func.func @transform_3(%arg0: i32) -> (i32, i32) {
    %c0_i32 = arith.constant 0 : i32
    %c0_i32_0 = arith.constant 0 : i32
    %c0_i32_1 = arith.constant 0 : i32
    return %c0_i32, %c0_i32_0 : i32, i32
  }
  func.func @transform_4(%arg0: i32) -> (i32, i32) {
    %c0_i32 = arith.constant 0 : i32
    %c0_i32_0 = arith.constant 0 : i32
    %c0_i32_1 = arith.constant 0 : i32
    return %c0_i32, %c0_i32_0 : i32, i32
  }
  func.func @transform_5(%arg0: i32) -> (i32, i32) {
    %c0_i32 = arith.constant 0 : i32
    %c0_i32_0 = arith.constant 0 : i32
    %c0_i32_1 = arith.constant 0 : i32
    return %c0_i32, %c0_i32_0 : i32, i32
  }
  func.func @transform_6(%arg0: i32) -> (i32, i32) {
    %c0_i32 = arith.constant 0 : i32
    %c0_i32_0 = arith.constant 0 : i32
    %c0_i32_1 = arith.constant 0 : i32
    return %c0_i32, %c0_i32_0 : i32, i32
  }
  func.func @transform_7(%arg0: i32) -> (i32, i32) {
    %c0_i32 = arith.constant 0 : i32
    %c0_i32_0 = arith.constant 0 : i32
    %c0_i32_1 = arith.constant 0 : i32
    return %c0_i32, %c0_i32_0 : i32, i32
  }
  func.func @transform_8(%arg0: i32) -> (i32, i32) {
    %c0_i32 = arith.constant 0 : i32
    %c0_i32_0 = arith.constant 0 : i32
    %c0_i32_1 = arith.constant 0 : i32
    return %c0_i32, %c0_i32_0 : i32, i32
  }
  func.func @transform_9(%arg0: i32) -> (i32, i32) {
    %c0_i32 = arith.constant 0 : i32
    %c0_i32_0 = arith.constant 0 : i32
    %c0_i32_1 = arith.constant 0 : i32
    return %c0_i32, %c0_i32_0 : i32, i32
  }
  func.func @transform_10(%arg0: i32) -> (i32, i32) {
    %c0_i32 = arith.constant 0 : i32
    %c0_i32_0 = arith.constant 0 : i32
    return %arg0, %c0_i32 : i32, i32
  }
  func.func @transform_11(%arg0: i32) -> (i32, i32) {
    %c0_i32 = arith.constant 0 : i32
    %c0_i32_0 = arith.constant 0 : i32
    return %arg0, %c0_i32 : i32, i32
  }
}

</mosaic_0001>

<llo_original>
// kernel: tpu_custom_call.1
$region0: #{tpu_custom_call.1}
  #allocation0 [shape = 'u32[]', space=smem, size = 0x4, offset = 0x4, fixed_abs, tag = 'smem constant byte address 0x4 - core index']
  #allocation1 [shape = 'u32[144,128]{1,0:T(1,128)}', space=vmem, size = 0x12000, scoped, tag = 'internal scratch']
  %s0 = inlined_call_operand.vmem [shape: f32[16,16], index: 0, kind: input, shape index: {}]
  %s1 = inlined_call_operand.hbm [shape: f32[16,16], index: 1, kind: input, shape index: {}]
  %s2 = inlined_call_operand.vmem [shape: bf16[16,8], index: 2, kind: input, shape index: {}]
  %s3 = inlined_call_operand.vmem [shape: f32[1,8], index: 3, kind: input, shape index: {}]
  %s4 = inlined_call_operand.vmem [shape: bf16[8,16], index: 4, kind: input, shape index: {}]
  %s5 = inlined_call_operand.vmem [shape: f32[1,16], index: 5, kind: input, shape index: {}]
  %s6 = inlined_call_operand.vmem [shape: bf16[16,8], index: 6, kind: input, shape index: {}]
  %s7 = inlined_call_operand.vmem [shape: f32[1,8], index: 7, kind: input, shape index: {}]
  %s8 = inlined_call_operand.vmem [shape: bf16[8,16], index: 8, kind: input, shape index: {}]
  %s9 = inlined_call_operand.vmem [shape: f32[1,16], index: 9, kind: input, shape index: {}]
  %s10 = inlined_call_operand.hbm [shape: f32[16,16], index: 10, kind: output, shape index: {0}]
  %s11 = inlined_call_operand.hbm [shape: f32[16,16], index: 11, kind: output, shape index: {1}]
  %12 = xla_tuple %s10, %s11
  %s13 = sld [smem:[#allocation0]]
  $region62: #{tpu_custom_call.1} parent=0
    _
  %s15 = ssub.s32 1, %s13
  %s16 = scalar_select 0, %s15, %s13
  $region1: #{tpu_custom_call.1} parent=0
    #allocation2 [shape = 'u8[8192]{0}', space=vmem, size = 0x2000, scoped, tag = 'input window, operand 1, single buffered']
    #allocation3 [shape = 's32[1]{0}', space=sflag, size = 0x4, scoped, tag = 'scoped memory for tpu_custom_call.1']
    #allocation4 [shape = 's32[1]{0}', space=sflag, size = 0x4, scoped, tag = 'scoped memory for tpu_custom_call.1']
    #allocation5 [shape = 'u8[8192]{0}', space=vmem, size = 0x2000, scoped, tag = 'output window, operand 0, single buffered']
    #allocation6 [shape = 'u8[8192]{0}', space=vmem, size = 0x2000, scoped, tag = 'output window, operand 1, single buffered']
    #allocation7 [shape = 's32[1]{0}', space=sflag, size = 0x4, scoped, tag = 'scoped memory for tpu_custom_call.1']
    %17 = vsyncpa [#allocation3], 0
    %18 = vsyncpa [#allocation4], 0
    %19 = vsyncpa [#allocation7], 0
    // Predicated region
    $region2: #{tpu_custom_call.1} parent=1 // pred_check
      _
    $region3: #{tpu_custom_call.1} parent=1 // pred_check_branch
      %21 = sbr.rel (0) target = $region5
    $region4: #{tpu_custom_call.1} parent=1 // pred_region
      _
    $region5: #{tpu_custom_call.1} parent=1 // pred_fallthru
      _
    // Predicated region
    $region6: #{tpu_custom_call.1} parent=1 // pred_check
      _
    $region7: #{tpu_custom_call.1} parent=1 // pred_check_branch
      %23 = sbr.rel (0) target = $region9
    $region8: #{tpu_custom_call.1} parent=1 // pred_region
      %s25 = ssub.s32 256, 256
      %26 = vsyncadd [#allocation3], %s25
      %s27 = sshll.u32 [#allocation2], 4
      %s28 = int_to_ptr.vmem [resolvable:$true] %s27
      %33 = dma.hbm_to_vmem [thread:$0]  %s1, 256, %s28, [#allocation3], 128, 128, 8
    $region9: #{tpu_custom_call.1} parent=1 // pred_fallthru
      _
    // Predicated region
    $region10: #{tpu_custom_call.1} parent=1 // pred_check
      _
    $region11: #{tpu_custom_call.1} parent=1 // pred_check_branch
      %35 = sbr.rel (0) target = $region13
    $region12: #{tpu_custom_call.1} parent=1 // pred_region
      _
    $region13: #{tpu_custom_call.1} parent=1 // pred_fallthru
      _
    // Predicated region
    $region14: #{tpu_custom_call.1} parent=1 // pred_check
      _
    $region15: #{tpu_custom_call.1} parent=1 // pred_check_branch
      %37 = sbr.rel (0) target = $region17
    $region16: #{tpu_custom_call.1} parent=1 // pred_region
      _
    $region17: #{tpu_custom_call.1} parent=1 // pred_fallthru
      _
    // Predicated region
    $region18: #{tpu_custom_call.1} parent=1 // pred_check
      _
    $region19: #{tpu_custom_call.1} parent=1 // pred_check_branch
      %39 = sbr.rel (0) target = $region21
    $region20: #{tpu_custom_call.1} parent=1 // pred_region
      _
    $region21: #{tpu_custom_call.1} parent=1 // pred_fallthru
      _
    // Predicated region
    $region22: #{tpu_custom_call.1} parent=1 // pred_check
      _
    $region23: #{tpu_custom_call.1} parent=1 // pred_check_branch
      %41 = sbr.rel (0) target = $region25
    $region24: #{tpu_custom_call.1} parent=1 // pred_region
      _
    $region25: #{tpu_custom_call.1} parent=1 // pred_fallthru
      _
    // Predicated region
    $region26: #{tpu_custom_call.1} parent=1 // pred_check
      _
    $region27: #{tpu_custom_call.1} parent=1 // pred_check_branch
      %43 = sbr.rel (0) target = $region29
    $region28: #{tpu_custom_call.1} parent=1 // pred_region
      _
    $region29: #{tpu_custom_call.1} parent=1 // pred_fallthru
      _
    // Predicated region
    $region30: #{tpu_custom_call.1} parent=1 // pred_check
      _
    $region31: #{tpu_custom_call.1} parent=1 // pred_check_branch
      %45 = sbr.rel (0) target = $region33
    $region32: #{tpu_custom_call.1} parent=1 // pred_region
      _
    $region33: #{tpu_custom_call.1} parent=1 // pred_fallthru
      _
    // Predicated region
    $region34: #{tpu_custom_call.1} parent=1 // pred_check
      _
    $region35: #{tpu_custom_call.1} parent=1 // pred_check_branch
      %47 = sbr.rel (0) target = $region37
    $region36: #{tpu_custom_call.1} parent=1 // pred_region
      _
    $region37: #{tpu_custom_call.1} parent=1 // pred_fallthru
      _
    // Predicated region
    $region38: #{tpu_custom_call.1} parent=1 // pred_check
      _
    $region39: #{tpu_custom_call.1} parent=1 // pred_check_branch
      %49 = sbr.rel (0) target = $region41
    $region40: #{tpu_custom_call.1} parent=1 // pred_region
      _
    $region41: #{tpu_custom_call.1} parent=1 // pred_fallthru
      _
    // Predicated region
    $region42: #{tpu_custom_call.1} parent=1 // pred_check
      _
    $region43: #{tpu_custom_call.1} parent=1 // pred_check_branch
      %51 = sbr.rel (0) target = $region45
    $region44: #{tpu_custom_call.1} parent=1 // pred_region
      %52 = dma.done [#allocation3], 256
    $region45: #{tpu_custom_call.1} parent=1 // pred_fallthru
      _
    %v54 = vld [vmem:[%s0] sm:$0xff]
    %v55 = vld [vmem:[%s0 + $0x8] sm:$0xff]
    %v56 = vld [vmem:[#allocation2] sm:$0xff]
    %v57 = vld [vmem:[#allocation2 + $0x8] sm:$0xff]
    %v58 = vpack.c.bf16 %v57, %v56
    %v59 = vld [vmem:[%s2] sm:$0xf]
    %v60 = vld [vmem:[%s2 + $0x4] sm:$0xf]
    %v61 = vld [vmem:[%s3] sm:$0x1]
    %v63 = vlaneseq
    %v64 = vshrl.u32 %v63, 7
    %v65 = vsub.s32 0, %v64
    %v66 = vrot.slane %v61, %v65
    %v70 = vunpack.c.l.b16 %v59
    %v71 = vunpack.c.l.b16 %v60
    %v72 = vpack.c.b16 %v71, %v70
    %vm74 = vcmask 130048
    %v76 = vsel %vm74, %v58, 0
    %78 = vmatprep.subr.bf16.mxu0 0
    %79 = vmatpush1.bf16.msra.mxu0 %v72
    %80 = vmatprep.subr.bf16.mxu0 0
    %81 = vmatpush1.bf16.msra.mxu0 0
    %82 = vmatprep.subr.bf16.mxu0 0
    %83 = vmatpush1.bf16.msra.mxu0 0
    %84 = vmatprep.subr.bf16.mxu0 0
    %85 = vmatpush1.bf16.msra.mxu0 0
    %86 = vmatprep.subr.bf16.mxu0 0
    %87 = vmatpush1.bf16.msra.mxu0 0
    %88 = vmatprep.subr.bf16.mxu0 0
    %89 = vmatpush1.bf16.msra.mxu0 0
    %90 = vmatprep.subr.bf16.mxu0 0
    %91 = vmatpush1.bf16.msra.mxu0 0
    %92 = vmatprep.subr.bf16.mxu0 0
    %93 = vmatpush1.bf16.msra.mxu0 0
    %94 = vmatprep.subr.bf16.mxu0 0
    %95 = vmatpush1.bf16.msra.mxu0 0
    %96 = vmatprep.subr.bf16.mxu0 0
    %97 = vmatpush1.bf16.msra.mxu0 0
    %98 = vmatprep.subr.bf16.mxu0 0
    %99 = vmatpush1.bf16.msra.mxu0 0
    %100 = vmatprep.subr.bf16.mxu0 0
    %101 = vmatpush1.bf16.msra.mxu0 0
    %102 = vmatprep.subr.bf16.mxu0 0
    %103 = vmatpush1.bf16.msra.mxu0 0
    %104 = vmatprep.subr.bf16.mxu0 0
    %105 = vmatpush1.bf16.msra.mxu0 0
    %106 = vmatprep.subr.bf16.mxu0 0
    %107 = vmatpush1.bf16.msra.mxu0 0
    %108 = vmatprep.subr.bf16.mxu0 0
    %109 = vmatpush1.bf16.msra.mxu0 0
    %110 = vmatprep.mubr.bf16.mxu0 0
    %111 = vmatmul.mubr.bf16.gmra.mrb[0].mxu0 %v76
    %v112 = vpop.f32.mrb[0].mxu0
    %v113 = vadd.f32 %v66, %v112
    %v114 = vpop.f32.mrb[0].mxu0
    %v115 = vpop.f32.mrb[0].mxu0
    %v116 = vadd.f32 %v66, %v115
    %v117 = vpop.f32.mrb[0].mxu0
    %118 = vdwg.mxu0
    %v119 = vmax.f32 %v113, 0.0
    %v120 = vmax.f32 %v116, 0.0
    %v121 = vpack.c.bf16 %v120, %v119
    %v122 = vld [vmem:[%s4] sm:$0xf]
    %vm123 = vcmask 64512
    %v125 = vsel %vm123, %v121, 0
    %vm127 = vcmask 1043456
    %v129 = vsel %vm127, %v122, 0
    %131 = vmatprep.subr.bf16.mxu0 0
    %132 = vmatpush1.bf16.msra.mxu0 %v129
    %133 = vmatprep.subr.bf16.mxu0 0
    %134 = vmatpush1.bf16.msra.mxu0 0
    %135 = vmatprep.subr.bf16.mxu0 0
    %136 = vmatpush1.bf16.msra.mxu0 0
    %137 = vmatprep.subr.bf16.mxu0 0
    %138 = vmatpush1.bf16.msra.mxu0 0
    %139 = vmatprep.subr.bf16.mxu0 0
    %140 = vmatpush1.bf16.msra.mxu0 0
    %141 = vmatprep.subr.bf16.mxu0 0
    %142 = vmatpush1.bf16.msra.mxu0 0
    %143 = vmatprep.subr.bf16.mxu0 0
    %144 = vmatpush1.bf16.msra.mxu0 0
    %145 = vmatprep.subr.bf16.mxu0 0
    %146 = vmatpush1.bf16.msra.mxu0 0
    %147 = vmatprep.subr.bf16.mxu0 0
    %148 = vmatpush1.bf16.msra.mxu0 0
    %149 = vmatprep.subr.bf16.mxu0 0
    %150 = vmatpush1.bf16.msra.mxu0 0
    %151 = vmatprep.subr.bf16.mxu0 0
    %152 = vmatpush1.bf16.msra.mxu0 0
    %153 = vmatprep.subr.bf16.mxu0 0
    %154 = vmatpush1.bf16.msra.mxu0 0
    %155 = vmatprep.subr.bf16.mxu0 0
    %156 = vmatpush1.bf16.msra.mxu0 0
    %157 = vmatprep.subr.bf16.mxu0 0
    %158 = vmatpush1.bf16.msra.mxu0 0
    %159 = vmatprep.subr.bf16.mxu0 0
    %160 = vmatpush1.bf16.msra.mxu0 0
    %161 = vmatprep.subr.bf16.mxu0 0
    %162 = vmatpush1.bf16.msra.mxu0 0
    %163 = vmatprep.mubr.bf16.mxu0 0
    %164 = vmatmul.mubr.bf16.gmra.mrb[0].mxu0 %v125
    %v165 = vpop.f32.mrb[0].mxu0
    %v166 = vadd.f32 0.0, %v165
    %v167 = vpop.f32.mrb[0].mxu0
    %v168 = vpop.f32.mrb[0].mxu0
    %v169 = vadd.f32 0.0, %v168
    %v170 = vpop.f32.mrb[0].mxu0
    %171 = vdwg.mxu0
    %v172 = vadd.f32 %v54, %v166
    %v173 = vadd.f32 %v55, %v169
    %v174 = vld [vmem:[%s5] sm:$0x1]
    %v176 = vlaneseq
    %v177 = vshrl.u32 %v176, 7
    %v178 = vsub.s32 0, %v177
    %v179 = vrot.slane %v174, %v178
    %v181 = vadd.f32 %v172, %v179
    %v182 = vadd.f32 %v173, %v179
    %v183 = vpack.c.bf16 %v182, %v181
    %v184 = vld [vmem:[%s6] sm:$0xf]
    %v185 = vld [vmem:[%s6 + $0x4] sm:$0xf]
    %v186 = vld [vmem:[%s7] sm:$0x1]
    %v188 = vlaneseq
    %v189 = vshrl.u32 %v188, 7
    %v190 = vsub.s32 0, %v189
    %v191 = vrot.slane %v186, %v190
    %v195 = vunpack.c.l.b16 %v184
    %v196 = vunpack.c.l.b16 %v185
    %v197 = vpack.c.b16 %v196, %v195
    %v200 = vsel %vm74, %v183, 0
    %202 = vmatprep.subr.bf16.mxu0 0
    %203 = vmatpush1.bf16.msra.mxu0 %v197
    %204 = vmatprep.subr.bf16.mxu0 0
    %205 = vmatpush1.bf16.msra.mxu0 0
    %206 = vmatprep.subr.bf16.mxu0 0
    %207 = vmatpush1.bf16.msra.mxu0 0
    %208 = vmatprep.subr.bf16.mxu0 0
    %209 = vmatpush1.bf16.msra.mxu0 0
    %210 = vmatprep.subr.bf16.mxu0 0
    %211 = vmatpush1.bf16.msra.mxu0 0
    %212 = vmatprep.subr.bf16.mxu0 0
    %213 = vmatpush1.bf16.msra.mxu0 0
    %214 = vmatprep.subr.bf16.mxu0 0
    %215 = vmatpush1.bf16.msra.mxu0 0
    %216 = vmatprep.subr.bf16.mxu0 0
    %217 = vmatpush1.bf16.msra.mxu0 0
    %218 = vmatprep.subr.bf16.mxu0 0
    %219 = vmatpush1.bf16.msra.mxu0 0
    %220 = vmatprep.subr.bf16.mxu0 0
    %221 = vmatpush1.bf16.msra.mxu0 0
    %222 = vmatprep.subr.bf16.mxu0 0
    %223 = vmatpush1.bf16.msra.mxu0 0
    %224 = vmatprep.subr.bf16.mxu0 0
    %225 = vmatpush1.bf16.msra.mxu0 0
    %226 = vmatprep.subr.bf16.mxu0 0
    %227 = vmatpush1.bf16.msra.mxu0 0
    %228 = vmatprep.subr.bf16.mxu0 0
    %229 = vmatpush1.bf16.msra.mxu0 0
    %230 = vmatprep.subr.bf16.mxu0 0
    %231 = vmatpush1.bf16.msra.mxu0 0
    %232 = vmatprep.subr.bf16.mxu0 0
    %233 = vmatpush1.bf16.msra.mxu0 0
    %234 = vmatprep.mubr.bf16.mxu0 0
    %235 = vmatmul.mubr.bf16.gmra.mrb[0].mxu0 %v200
    %v236 = vpop.f32.mrb[0].mxu0
    %v237 = vadd.f32 %v191, %v236
    %v238 = vpop.f32.mrb[0].mxu0
    %v239 = vpop.f32.mrb[0].mxu0
    %v240 = vadd.f32 %v191, %v239
    %v241 = vpop.f32.mrb[0].mxu0
    %242 = vdwg.mxu0
    %v243 = vmax.f32 %v237, 0.0
    %v244 = vmax.f32 %v240, 0.0
    %v245 = vpack.c.bf16 %v244, %v243
    %v246 = vld [vmem:[%s8] sm:$0xf]
    %v248 = vsel %vm123, %v245, 0
    %v251 = vsel %vm127, %v246, 0
    %253 = vmatprep.subr.bf16.mxu0 0
    %254 = vmatpush1.bf16.msra.mxu0 %v251
    %255 = vmatprep.subr.bf16.mxu0 0
    %256 = vmatpush1.bf16.msra.mxu0 0
    %257 = vmatprep.subr.bf16.mxu0 0
    %258 = vmatpush1.bf16.msra.mxu0 0
    %259 = vmatprep.subr.bf16.mxu0 0
    %260 = vmatpush1.bf16.msra.mxu0 0
    %261 = vmatprep.subr.bf16.mxu0 0
    %262 = vmatpush1.bf16.msra.mxu0 0
    %263 = vmatprep.subr.bf16.mxu0 0
    %264 = vmatpush1.bf16.msra.mxu0 0
    %265 = vmatprep.subr.bf16.mxu0 0
    %266 = vmatpush1.bf16.msra.mxu0 0
    %267 = vmatprep.subr.bf16.mxu0 0
    %268 = vmatpush1.bf16.msra.mxu0 0
    %269 = vmatprep.subr.bf16.mxu0 0
    %270 = vmatpush1.bf16.msra.mxu0 0
    %271 = vmatprep.subr.bf16.mxu0 0
    %272 = vmatpush1.bf16.msra.mxu0 0
    %273 = vmatprep.subr.bf16.mxu0 0
    %274 = vmatpush1.bf16.msra.mxu0 0
    %275 = vmatprep.subr.bf16.mxu0 0
    %276 = vmatpush1.bf16.msra.mxu0 0
    %277 = vmatprep.subr.bf16.mxu0 0
    %278 = vmatpush1.bf16.msra.mxu0 0
    %279 = vmatprep.subr.bf16.mxu0 0
    %280 = vmatpush1.bf16.msra.mxu0 0
    %281 = vmatprep.subr.bf16.mxu0 0
    %282 = vmatpush1.bf16.msra.mxu0 0
    %283 = vmatprep.subr.bf16.mxu0 0
    %284 = vmatpush1.bf16.msra.mxu0 0
    %285 = vmatprep.mubr.bf16.mxu0 0
    %286 = vmatmul.mubr.bf16.gmra.mrb[0].mxu0 %v248
    %v287 = vpop.f32.mrb[0].mxu0
    %v288 = vadd.f32 0.0, %v287
    %v289 = vpop.f32.mrb[0].mxu0
    %v290 = vpop.f32.mrb[0].mxu0
    %v291 = vadd.f32 0.0, %v290
    %v292 = vpop.f32.mrb[0].mxu0
    %293 = vdwg.mxu0
    %v294 = vadd.f32 %v56, %v288
    %v295 = vadd.f32 %v57, %v291
    %v296 = vld [vmem:[%s9] sm:$0x1]
    %v298 = vlaneseq
    %v299 = vshrl.u32 %v298, 7
    %v300 = vsub.s32 0, %v299
    %v301 = vrot.slane %v296, %v300
    %v303 = vadd.f32 %v294, %v301
    %v304 = vadd.f32 %v295, %v301
    %305 = vst.msk [vmem:[#allocation5] sm:$0xff] %vm74, %v181
    %306 = vst.msk [vmem:[#allocation5 + $0x8] sm:$0xff] %vm74, %v182
    %307 = vst.msk [vmem:[#allocation6] sm:$0xff] %vm74, %v303
    %308 = vst.msk [vmem:[#allocation6 + $0x8] sm:$0xff] %vm74, %v304
    // Predicated region
    $region46: #{tpu_custom_call.1} parent=1 // pred_check
      _
    $region47: #{tpu_custom_call.1} parent=1 // pred_check_branch
      %310 = sbr.rel (0) target = $region49
    $region48: #{tpu_custom_call.1} parent=1 // pred_region
      %s312 = ssub.s32 256, 256
      %313 = vsyncadd [#allocation4], %s312
      %s314 = sshll.u32 [#allocation5], 4
      %s315 = int_to_ptr.vmem [resolvable:$true] %s314
      %320 = dma.vmem_to_hbm [thread:$0]  %s315, 256, %s10, [#allocation4], 128, 128, 8
    $region49: #{tpu_custom_call.1} parent=1 // pred_fallthru
      _
    // Predicated region
    $region50: #{tpu_custom_call.1} parent=1 // pred_check
      _
    $region51: #{tpu_custom_call.1} parent=1 // pred_check_branch
      %322 = sbr.rel (0) target = $region53
    $region52: #{tpu_custom_call.1} parent=1 // pred_region
      %s324 = ssub.s32 256, 256
      %325 = vsyncadd [#allocation7], %s324
      %s326 = sshll.u32 [#allocation6], 4
      %s327 = int_to_ptr.vmem [resolvable:$true] %s326
      %332 = dma.vmem_to_hbm [thread:$0]  %s327, 256, %s11, [#allocation7], 128, 128, 8
    $region53: #{tpu_custom_call.1} parent=1 // pred_fallthru
      _
    // Predicated region
    $region54: #{tpu_custom_call.1} parent=1 // pred_check
      _
    $region55: #{tpu_custom_call.1} parent=1 // pred_check_branch
      %334 = sbr.rel (0) target = $region57
    $region56: #{tpu_custom_call.1} parent=1 // pred_region
      %335 = dma.done [#allocation4], 256
    $region57: #{tpu_custom_call.1} parent=1 // pred_fallthru
      _
    // Predicated region
    $region58: #{tpu_custom_call.1} parent=1 // pred_check
      _
    $region59: #{tpu_custom_call.1} parent=1 // pred_check_branch
      %337 = sbr.rel (0) target = $region61
    $region60: #{tpu_custom_call.1} parent=1 // pred_region
      %338 = dma.done [#allocation7], 256
    $region61: #{tpu_custom_call.1} parent=1 // pred_fallthru
      _
    %339 = vsyncpa [#allocation3], 1
    %340 = vsyncpa [#allocation4], 1
    %341 = vsyncpa [#allocation7], 1

</llo_original>
